<compile_context>
chip_gen: v5e
topology: v5e:2x2
jax: 0.10.0
libtpu: 0.0.40
codegen_flags: <defaults>
</compile_context>

<pallas_src>
import jax
import jax.numpy as jnp
import numpy as np
from jax.experimental import pallas as pl
from jax.experimental.pallas import tpu as pltpu

# Module constants (from TaylorExp.__init__): r2 = 1, rd = 2, rrd = 1
R2 = 1.0
RD = 2.0
RRD = 1.0
QUAD_SCALE = 1.0 / (R2 * RD)   # 0.5 -- exact power of two
LIN_SCALE = 1.0 / RRD          # 1.0 -- no-op, not emitted


def _vmem_budget_bytes() -> int:
    """Tile VMEM budget, generation-aware (v5e/v6e: 128 MiB; v7x: 64 MiB/TC)."""
    cap = None
    try:
        cap = getattr(pltpu.get_tpu_info(), "vmem_capacity_bytes", None)
    except Exception:
        cap = None
    if cap is None:
        cap = 64 * 1024 * 1024          # conservative fallback (v7x per-TC)
    if cap >= 128 * 1024 * 1024:
        return 60 * 1024 * 1024         # v5e / v6e: bigger tiles for large D
    return 28 * 1024 * 1024             # v7x-safe budget


def _vmem_limit_bytes() -> int:
    # Scoped-VMEM limit: tile budget + headroom for surrounding XLA fusions.
    return _vmem_budget_bytes() + 12 * 1024 * 1024


def _taylor_exp_kernel(x_ref, o_ref):
    # x_ref: (TN, D), o_ref: (TN, 1 + D + D*D)
    x = x_ref[...]
    tn, d = x.shape

    # Fold 1/(r2*rd) into one operand (D-sized multiply instead of D^2-sized).
    xs = x * QUAD_SCALE

    ones = jnp.ones((tn, 1), dtype=x.dtype)          # x[..., :1] ** 0

    # Lane-dense quadratic block: column group j (width D) holds xs[:, j] * x,
    # i.e. flatten(x (x) x) / (r2 * rd) with NO (TN, D, D) intermediate and
    # NO trailing reshape/relayout.
    slabs = [xs[:, j:j + 1] * x for j in range(d)]

    # Assemble the whole feature row in-register and issue ONE contiguous
    # store at lane offset 0 (avoids masked / rotated partial stores).
    feats = jnp.concatenate([ones, x] + slabs, axis=-1)   # (TN, 1 + D + D*D)
    o_ref[...] = feats.astype(o_ref.dtype)


def _pick_row_tile(n: int, d: int, itemsize: int) -> int:
    """Largest row tile (multiple of 8) fitting the VMEM budget, capped so the
    grid keeps >= 4 steps (>= 2 blocks per v7x TensorCore for pipelining)."""
    out_d = 1 + d + d * d
    # Per-row VMEM bytes: double-buffered in/out tiles + in-register assembly
    # (x, xs, slabs, concatenated feature row). No 3-D intermediate anymore.
    per_row = itemsize * (4 * d + 3 * out_d + d * d)
    tile = int(_vmem_budget_bytes() // per_row)
    tile = min(tile, 1024)
    n_ceil8 = -(-n // 8) * 8
    tile = min(tile, n_ceil8)
    if n_ceil8 >= 32:                   # keep >= 4 grid steps if possible
        tile = min(tile, max(8, (n // 4) // 8 * 8))
    tile = max(8, tile - tile % 8)
    return tile


def taylor_exp(x: jax.Array, *, row_tile=None) -> jax.Array:
    """Apply the TaylorExp feature map along the last axis of x."""
    *lead, d = x.shape
    n = int(np.prod(lead)) if lead else 1
    out_d = 1 + d + d * d
    itemsize = jnp.dtype(x.dtype).itemsize

    if row_tile is None:
        row_tile = _pick_row_tile(n, d, itemsize)

    x2d = x.reshape(n, d)

    # Ragged last block (when row_tile does not divide n) is handled by
    # Pallas' Blocked-spec masking: OOB reads feed rows whose stores are
    # discarded; no wrapper-side pad or post-call slice (single HBM write).
    grid = (pl.cdiv(n, row_tile),)

    cost = pl.CostEstimate(
        flops=n * d * d,                                   # outer-product muls
        transcendentals=0,
        bytes_accessed=itemsize * (n * d + n * out_d),     # 1 read + 1 write
    )

    out2d = pl.pallas_call(
        _taylor_exp_kernel,
        out_shape=jax.ShapeDtypeStruct((n, out_d), x.dtype),
        grid_spec=pltpu.PrefetchScalarGridSpec(
            num_scalar_prefetch=0,
            grid=grid,
            in_specs=[pl.BlockSpec((row_tile, d), lambda i: (i, 0))],
            out_specs=pl.BlockSpec((row_tile, out_d), lambda i: (i, 0)),
        ),
        compiler_params=pltpu.CompilerParams(
            dimension_semantics=("parallel",),
            vmem_limit_bytes=_vmem_limit_bytes(),
        ),
        cost_estimate=cost,
    )(x2d)

    return out2d.reshape(*lead, out_d)


def taylor_exp_ref(x: jax.Array) -> jax.Array:
    """Pure-JAX reference mirroring the PyTorch forward exactly."""
    x2 = (x[..., :, None] * x[..., None, :])
    x2 = x2.reshape(*x.shape[:-1], x.shape[-1] * x.shape[-1]) / R2
    return jnp.concatenate([x[..., :1] ** 0, x / RRD, x2 / RD], axis=-1)


if __name__ == "__main__":
    key = jax.random.PRNGKey(0)
    B, H, L, D = 2, 4, 16, 16          # small shapes; feature dim D last
    x = jax.random.normal(key, (B, H, L, D), dtype=jnp.float32)

    out = jax.block_until_ready(taylor_exp(x))

    ref = taylor_exp_ref(x)
    np.testing.assert_allclose(np.asarray(out), np.asarray(ref),
                               rtol=1e-6, atol=1e-6)
    assert out.shape == (B, H, L, 1 + D + D * D)

    print("KERNEL_OK")
</pallas_src>

<mosaic_0001>
module attributes {stable_mosaic.version = 11 : i64} {
  func.func @_taylor_exp_kernel(%arg0: i32, %arg1: memref<32x16xf32, #tpu.memory_space<vmem>>, %arg2: memref<32x273xf32, #tpu.memory_space<vmem>>) attributes {dimension_semantics = [#tpu.dimension_semantics<parallel>], iteration_bounds = array<i64: 4>, scalar_prefetch = 0 : i64, scratch_operands = 0 : i64, tpu.core_type = #tpu.core_type<tc>, window_params = [{transform_indices = @transform_0, window_bounds = array<i64: 32, 16>}, {transform_indices = @transform_1, window_bounds = array<i64: 32, 273>}]} {
    %c0 = arith.constant 0 : index
    %c0_0 = arith.constant 0 : index
    %0 = vector.load %arg1[%c0, %c0_0] : memref<32x16xf32, #tpu.memory_space<vmem>>, vector<32x16xf32>
    %cst = arith.constant 5.000000e-01 : f32
    %1 = vector.broadcast %cst : f32 to vector<32x16xf32>
    %2 = arith.mulf %0, %1 : vector<32x16xf32>
    %cst_1 = arith.constant 1.000000e+00 : f32
    %3 = vector.broadcast %cst_1 : f32 to vector<32x1xf32>
    %4 = vector.extract_strided_slice %2 {offsets = [0, 0], sizes = [32, 1], strides = [1, 1]} : vector<32x16xf32> to vector<32x1xf32>
    %5 = vector.broadcast %4 : vector<32x1xf32> to vector<32x16xf32>
    %6 = arith.mulf %5, %0 : vector<32x16xf32>
    %7 = vector.extract_strided_slice %2 {offsets = [0, 1], sizes = [32, 1], strides = [1, 1]} : vector<32x16xf32> to vector<32x1xf32>
    %8 = vector.broadcast %7 : vector<32x1xf32> to vector<32x16xf32>
    %9 = arith.mulf %8, %0 : vector<32x16xf32>
    %10 = vector.extract_strided_slice %2 {offsets = [0, 2], sizes = [32, 1], strides = [1, 1]} : vector<32x16xf32> to vector<32x1xf32>
    %11 = vector.broadcast %10 : vector<32x1xf32> to vector<32x16xf32>
    %12 = arith.mulf %11, %0 : vector<32x16xf32>
    %13 = vector.extract_strided_slice %2 {offsets = [0, 3], sizes = [32, 1], strides = [1, 1]} : vector<32x16xf32> to vector<32x1xf32>
    %14 = vector.broadcast %13 : vector<32x1xf32> to vector<32x16xf32>
    %15 = arith.mulf %14, %0 : vector<32x16xf32>
    %16 = vector.extract_strided_slice %2 {offsets = [0, 4], sizes = [32, 1], strides = [1, 1]} : vector<32x16xf32> to vector<32x1xf32>
    %17 = vector.broadcast %16 : vector<32x1xf32> to vector<32x16xf32>
    %18 = arith.mulf %17, %0 : vector<32x16xf32>
    %19 = vector.extract_strided_slice %2 {offsets = [0, 5], sizes = [32, 1], strides = [1, 1]} : vector<32x16xf32> to vector<32x1xf32>
    %20 = vector.broadcast %19 : vector<32x1xf32> to vector<32x16xf32>
    %21 = arith.mulf %20, %0 : vector<32x16xf32>
    %22 = vector.extract_strided_slice %2 {offsets = [0, 6], sizes = [32, 1], strides = [1, 1]} : vector<32x16xf32> to vector<32x1xf32>
    %23 = vector.broadcast %22 : vector<32x1xf32> to vector<32x16xf32>
    %24 = arith.mulf %23, %0 : vector<32x16xf32>
    %25 = vector.extract_strided_slice %2 {offsets = [0, 7], sizes = [32, 1], strides = [1, 1]} : vector<32x16xf32> to vector<32x1xf32>
    %26 = vector.broadcast %25 : vector<32x1xf32> to vector<32x16xf32>
    %27 = arith.mulf %26, %0 : vector<32x16xf32>
    %28 = vector.extract_strided_slice %2 {offsets = [0, 8], sizes = [32, 1], strides = [1, 1]} : vector<32x16xf32> to vector<32x1xf32>
    %29 = vector.broadcast %28 : vector<32x1xf32> to vector<32x16xf32>
    %30 = arith.mulf %29, %0 : vector<32x16xf32>
    %31 = vector.extract_strided_slice %2 {offsets = [0, 9], sizes = [32, 1], strides = [1, 1]} : vector<32x16xf32> to vector<32x1xf32>
    %32 = vector.broadcast %31 : vector<32x1xf32> to vector<32x16xf32>
    %33 = arith.mulf %32, %0 : vector<32x16xf32>
    %34 = vector.extract_strided_slice %2 {offsets = [0, 10], sizes = [32, 1], strides = [1, 1]} : vector<32x16xf32> to vector<32x1xf32>
    %35 = vector.broadcast %34 : vector<32x1xf32> to vector<32x16xf32>
    %36 = arith.mulf %35, %0 : vector<32x16xf32>
    %37 = vector.extract_strided_slice %2 {offsets = [0, 11], sizes = [32, 1], strides = [1, 1]} : vector<32x16xf32> to vector<32x1xf32>
    %38 = vector.broadcast %37 : vector<32x1xf32> to vector<32x16xf32>
    %39 = arith.mulf %38, %0 : vector<32x16xf32>
    %40 = vector.extract_strided_slice %2 {offsets = [0, 12], sizes = [32, 1], strides = [1, 1]} : vector<32x16xf32> to vector<32x1xf32>
    %41 = vector.broadcast %40 : vector<32x1xf32> to vector<32x16xf32>
    %42 = arith.mulf %41, %0 : vector<32x16xf32>
    %43 = vector.extract_strided_slice %2 {offsets = [0, 13], sizes = [32, 1], strides = [1, 1]} : vector<32x16xf32> to vector<32x1xf32>
    %44 = vector.broadcast %43 : vector<32x1xf32> to vector<32x16xf32>
    %45 = arith.mulf %44, %0 : vector<32x16xf32>
    %46 = vector.extract_strided_slice %2 {offsets = [0, 14], sizes = [32, 1], strides = [1, 1]} : vector<32x16xf32> to vector<32x1xf32>
    %47 = vector.broadcast %46 : vector<32x1xf32> to vector<32x16xf32>
    %48 = arith.mulf %47, %0 : vector<32x16xf32>
    %49 = vector.extract_strided_slice %2 {offsets = [0, 15], sizes = [32, 1], strides = [1, 1]} : vector<32x16xf32> to vector<32x1xf32>
    %50 = vector.broadcast %49 : vector<32x1xf32> to vector<32x16xf32>
    %51 = arith.mulf %50, %0 : vector<32x16xf32>
    %52 = tpu.concatenate %3, %0, %6, %9, %12, %15, %18, %21, %24, %27, %30, %33, %36, %39, %42, %45 in 1 : vector<32x1xf32>, vector<32x16xf32>, vector<32x16xf32>, vector<32x16xf32>, vector<32x16xf32>, vector<32x16xf32>, vector<32x16xf32>, vector<32x16xf32>, vector<32x16xf32>, vector<32x16xf32>, vector<32x16xf32>, vector<32x16xf32>, vector<32x16xf32>, vector<32x16xf32>, vector<32x16xf32>, vector<32x16xf32> -> vector<32x241xf32>
    %53 = tpu.concatenate %48, %51 in 1 : vector<32x16xf32>, vector<32x16xf32> -> vector<32x32xf32>
    %54 = tpu.concatenate %52, %53 in 1 : vector<32x241xf32>, vector<32x32xf32> -> vector<32x273xf32>
    %c0_2 = arith.constant 0 : index
    %c0_3 = arith.constant 0 : index
    %55 = vector.load %arg2[%c0_2, %c0_3] : memref<32x273xf32, #tpu.memory_space<vmem>>, vector<32x273xf32>
    tpu.vector_store %arg2[%c0_2, %c0_3], %54 {strides = array<i32>} : memref<32x273xf32, #tpu.memory_space<vmem>>, vector<32x273xf32>,
    return
  }
  func.func @transform_0(%arg0: i32) -> (i32, i32) {
    %c0_i32 = arith.constant 0 : i32
    %c0_i32_0 = arith.constant 0 : i32
    return %arg0, %c0_i32 : i32, i32
  }
  func.func @transform_1(%arg0: i32) -> (i32, i32) {
    %c0_i32 = arith.constant 0 : i32
    %c0_i32_0 = arith.constant 0 : i32
    return %arg0, %c0_i32 : i32, i32
  }
}

</mosaic_0001>

<llo_original>
// kernel: tpu_custom_call.1
$region0: #{tpu_custom_call.1}
  #allocation0 [shape = 'u32[]', space=smem, size = 0x4, offset = 0x4, fixed_abs, tag = 'smem constant byte address 0x4 - core index']
  #allocation1 [shape = 'u32[72,128]{1,0:T(1,128)}', space=vmem, size = 0x9000, scoped, tag = 'internal scratch']
  %s0 = inlined_call_operand.vmem [shape: f32[128,16], index: 0, kind: input, shape index: {}]
  %s1 = inlined_call_operand.vmem [shape: f32[128,273], index: 1, kind: output, shape index: {}]
  %s2 = sld [smem:[#allocation0]]
  $region37: #{tpu_custom_call.1} parent=0
    _
  %s4 = ssub.s32 1, %s2
  %s5 = scalar_select 0, %s4, %s2
  loop: start=0, step=1, limit=6
  $region2: #{tpu_custom_call.1} parent=0 // loop_pre_header
    _
  $region3: #{tpu_custom_call.1} parent=0 // loop_header
    %s7 = sphi 0, %s11
    %p8 = scmp.ge.s32.totalorder %s7, 6
    %s17 = sphi 0, %s19
    %s20 = sphi 0, %s17
    %s21 = sphi 0, %s20
    %s37 = sphi 0, %s21
    %s43 = sphi 0, %s45
    %s46 = sphi 0, %s43
    %s47 = sphi 0, %s46
    %s63 = sphi 0, %s47
  $region4: #{tpu_custom_call.1} parent=0 // loop_header_branch
    %10 = sbr.rel (%p8) target = $region8
  $region5: #{tpu_custom_call.1} parent=0 // loop_body
    %s12 = ssub.s32 %s7, 1
    %s13 = ssub.s32 %s7, 2
    %s14 = sadd.s32 %s7, 1
    %s15 = ssub.s32 %s7, %s14
    %p16 = scmp.eq.s32.totalorder %s15, 0
    %s18 = sadd.s32 %s17, 1
    %s19 = scalar_select %p16, %s17, %s18
    %p22 = pneg %p16
    %p23 = scmp.eq.s32.totalorder %s7, 3
    %p24 = por %p22, %p23
    %p25 = scmp.ne.s32.totalorder %s17, %s20
    %p26 = scmp.eq.s32.totalorder %s7, 0
    %p27 = por %p25, %p26
    %p28 = scmp.ne.s32.totalorder %s17, %s20
    %p29 = scmp.eq.s32.totalorder %s12, 3
    %p30 = por %p28, %p29
    %p31 = scmp.ne.s32.totalorder %s20, %s21
    %p32 = scmp.eq.s32.totalorder %s12, 0
    %p33 = por %p31, %p32
    %p34 = scmp.ne.s32.totalorder %s20, %s21
    %p35 = scmp.eq.s32.totalorder %s13, 3
    %p36 = por %p34, %p35
    %p38 = scmp.ne.s32.totalorder %s21, %s37
    %p39 = scmp.eq.s32.totalorder %s13, 0
    %p40 = por %p38, %p39
    %s41 = ssub.s32 %s7, %s14
    %p42 = scmp.eq.s32.totalorder %s41, 0
    %s44 = sadd.s32 %s43, 1
    %s45 = scalar_select %p42, %s43, %s44
    %p48 = pneg %p42
    %p49 = scmp.eq.s32.totalorder %s7, 3
    %p50 = por %p48, %p49
    %p51 = scmp.ne.s32.totalorder %s43, %s46
    %p52 = scmp.eq.s32.totalorder %s7, 0
    %p53 = por %p51, %p52
    %p54 = scmp.ne.s32.totalorder %s43, %s46
    %p55 = scmp.eq.s32.totalorder %s12, 3
    %p56 = por %p54, %p55
    %p57 = scmp.ne.s32.totalorder %s46, %s47
    %p58 = scmp.eq.s32.totalorder %s12, 0
    %p59 = por %p57, %p58
    %p60 = scmp.ne.s32.totalorder %s46, %s47
    %p61 = scmp.eq.s32.totalorder %s13, 3
    %p62 = por %p60, %p61
    %p64 = scmp.ne.s32.totalorder %s47, %s63
    %p65 = scmp.eq.s32.totalorder %s13, 0
    %p66 = por %p64, %p65
    %p67 = scmp.le.s32.totalorder 1, %s7
    %p68 = scmp.lt.s32.totalorder %s7, 5
    %p69 = pnand %p67, %p68
    %p70 = pneg %p69
    // Predicated region
    $region9: #{tpu_custom_call.1} parent=5 // pred_check
      _
    $region10: #{tpu_custom_call.1} parent=5 // pred_check_branch
      %72 = sbr.rel (%p69) target = $region12
    $region11: #{tpu_custom_call.1} parent=5 // pred_region
      %s73 = ssub.s32 %s7, 1
    $region12: #{tpu_custom_call.1} parent=5 // pred_fallthru
      _
    %p74 = scmp.lt.s32.totalorder %s7, 4
    // Predicated region
    $region13: #{tpu_custom_call.1} parent=5 // pred_check
      %p75 = pneg %p74
    $region14: #{tpu_custom_call.1} parent=5 // pred_check_branch
      %77 = sbr.rel (%p75) target = $region16
    $region15: #{tpu_custom_call.1} parent=5 // pred_region
      // Predicated region
      $region17: #{tpu_custom_call.1} parent=15 // pred_check
        %p78 = pneg %p27
      $region18: #{tpu_custom_call.1} parent=15 // pred_check_branch
        %80 = sbr.rel (%p78) target = $region20
      $region19: #{tpu_custom_call.1} parent=15 // pred_region
        %s81 = smul.u32 4, %s7
        %p82 = scmp.lt.s32.totalorder %s81, 15
        %s83 = scalar_select %p82, %s81, 15
        %s84 = smul.addr %s83, 8
        %s85 = scalar_lea.vmem %s0, %s84
        %s86 = smul.u32 4, %s7
      $region20: #{tpu_custom_call.1} parent=15 // pred_fallthru
        _
    $region16: #{tpu_custom_call.1} parent=5 // pred_fallthru
      _
    %p87 = scmp.le.s32.totalorder 1, %s7
    %p88 = scmp.lt.s32.totalorder %s7, 5
    %p89 = pnand %p87, %p88
    %p90 = pneg %p89
    // Predicated region
    $region21: #{tpu_custom_call.1} parent=5 // pred_check
      _
    $region22: #{tpu_custom_call.1} parent=5 // pred_check_branch
      %92 = sbr.rel (%p89) target = $region24
    $region23: #{tpu_custom_call.1} parent=5 // pred_region
      %s93 = ssub.s32 %s7, 1
      %s94 = smul.u32 4, %s12
      %p95 = scmp.lt.s32.totalorder %s94, 15
      %s96 = scalar_select %p95, %s94, 15
      %s97 = smul.addr %s96, 8
      %s98 = scalar_lea.vmem %s0, %s97
      %p99 = pneg %p33
      %p100 = pneg %p30
      %p101 = pneg %p59
      %p102 = pneg %p56
      %s103 = smul.u32 4, %s12
      %p104 = scmp.lt.s32.totalorder %s103, 15
      %s105 = scalar_select %p104, %s103, 15
      %s106 = smul.addr %s105, 3
      %s107 = smul.addr %s106, 8
      %s108 = scalar_lea.vmem %s1, %s107
      %s109 = smul.u32 4, %s12
      %p110 = scmp.lt.s32.totalorder %s109, 15
      %s111 = scalar_select %p110, %s109, 15
      %s112 = smul.addr %s111, 8
      %s113 = scalar_lea.vmem %s0, %s112
      %s114 = smul.u32 4, %s12
      %s115 = smul.u32 4, %s12
      %p116 = scmp.lt.s32.totalorder %s115, 15
      %s117 = scalar_select %p116, %s115, 15
      %s118 = smul.addr %s117, 3
      %s119 = smul.addr %s118, 8
      %s120 = scalar_lea.vmem %s1, %s119
      %s121 = smul.u32 4, %s12
      %v122 = vld [vmem:[%s113] sm:$0xff]
      %v123 = vld [vmem:[%s113 + $0x8] sm:$0xff]
      %v124 = vld [vmem:[%s113 + $0x10] sm:$0xff]
      %v125 = vld [vmem:[%s113 + $0x18] sm:$0xff]
      %v126 = vmul.f32 %v122, 0.5
      %v127 = vmul.f32 %v123, 0.5
      %v128 = vmul.f32 %v124, 0.5
      %v129 = vmul.f32 %v125, 0.5
      %131 = vset.pattern.permute.xlu0 0
      %132 = vperm.xlu0 %131, %v126
      %v133 = vpop.permute.xlu0 %132
      %136 = vset.pattern.permute.xlu0 0
      %137 = vperm.xlu0 %136, %v127
      %v138 = vpop.permute.xlu0 %137
      %141 = vset.pattern.permute.xlu0 0
      %142 = vperm.xlu0 %141, %v128
      %v143 = vpop.permute.xlu0 %142
      %146 = vset.pattern.permute.xlu0 0
      %147 = vperm.xlu0 %146, %v129
      %v148 = vpop.permute.xlu0 %147
      %v150 = vmul.f32 %v133, %v122
      %v151 = vmul.f32 %v138, %v123
      %v152 = vmul.f32 %v143, %v124
      %v153 = vmul.f32 %v148, %v125
      %154 = vset.pattern.permute.xlu0 1
      %155 = vperm.xlu0 %154, %v126
      %v156 = vpop.permute.xlu0 %155
      %158 = vset.pattern.permute.xlu0 1
      %159 = vperm.xlu0 %158, %v127
      %v160 = vpop.permute.xlu0 %159
      %162 = vset.pattern.permute.xlu0 1
      %163 = vperm.xlu0 %162, %v128
      %v164 = vpop.permute.xlu0 %163
      %166 = vset.pattern.permute.xlu0 1
      %167 = vperm.xlu0 %166, %v129
      %v168 = vpop.permute.xlu0 %167
      %v170 = vmul.f32 %v156, %v122
      %v171 = vmul.f32 %v160, %v123
      %v172 = vmul.f32 %v164, %v124
      %v173 = vmul.f32 %v168, %v125
      %174 = vset.pattern.permute.xlu0 2
      %175 = vperm.xlu0 %174, %v126
      %v176 = vpop.permute.xlu0 %175
      %178 = vset.pattern.permute.xlu0 2
      %179 = vperm.xlu0 %178, %v127
      %v180 = vpop.permute.xlu0 %179
      %182 = vset.pattern.permute.xlu0 2
      %183 = vperm.xlu0 %182, %v128
      %v184 = vpop.permute.xlu0 %183
      %186 = vset.pattern.permute.xlu0 2
      %187 = vperm.xlu0 %186, %v129
      %v188 = vpop.permute.xlu0 %187
      %v190 = vmul.f32 %v176, %v122
      %v191 = vmul.f32 %v180, %v123
      %v192 = vmul.f32 %v184, %v124
      %v193 = vmul.f32 %v188, %v125
      %194 = vset.pattern.permute.xlu0 3
      %195 = vperm.xlu0 %194, %v126
      %v196 = vpop.permute.xlu0 %195
      %198 = vset.pattern.permute.xlu0 3
      %199 = vperm.xlu0 %198, %v127
      %v200 = vpop.permute.xlu0 %199
      %202 = vset.pattern.permute.xlu0 3
      %203 = vperm.xlu0 %202, %v128
      %v204 = vpop.permute.xlu0 %203
      %206 = vset.pattern.permute.xlu0 3
      %207 = vperm.xlu0 %206, %v129
      %v208 = vpop.permute.xlu0 %207
      %v210 = vmul.f32 %v196, %v122
      %v211 = vmul.f32 %v200, %v123
      %v212 = vmul.f32 %v204, %v124
      %v213 = vmul.f32 %v208, %v125
      %214 = vset.pattern.permute.xlu0 4
      %215 = vperm.xlu0 %214, %v126
      %v216 = vpop.permute.xlu0 %215
      %218 = vset.pattern.permute.xlu0 4
      %219 = vperm.xlu0 %218, %v127
      %v220 = vpop.permute.xlu0 %219
      %222 = vset.pattern.permute.xlu0 4
      %223 = vperm.xlu0 %222, %v128
      %v224 = vpop.permute.xlu0 %223
      %226 = vset.pattern.permute.xlu0 4
      %227 = vperm.xlu0 %226, %v129
      %v228 = vpop.permute.xlu0 %227
      %v230 = vmul.f32 %v216, %v122
      %v231 = vmul.f32 %v220, %v123
      %v232 = vmul.f32 %v224, %v124
      %v233 = vmul.f32 %v228, %v125
      %234 = vset.pattern.permute.xlu0 5
      %235 = vperm.xlu0 %234, %v126
      %v236 = vpop.permute.xlu0 %235
      %238 = vset.pattern.permute.xlu0 5
      %239 = vperm.xlu0 %238, %v127
      %v240 = vpop.permute.xlu0 %239
      %242 = vset.pattern.permute.xlu0 5
      %243 = vperm.xlu0 %242, %v128
      %v244 = vpop.permute.xlu0 %243
      %246 = vset.pattern.permute.xlu0 5
      %247 = vperm.xlu0 %246, %v129
      %v248 = vpop.permute.xlu0 %247
      %v250 = vmul.f32 %v236, %v122
      %v251 = vmul.f32 %v240, %v123
      %v252 = vmul.f32 %v244, %v124
      %v253 = vmul.f32 %v248, %v125
      %254 = vset.pattern.permute.xlu0 6
      %255 = vperm.xlu0 %254, %v126
      %v256 = vpop.permute.xlu0 %255
      %258 = vset.pattern.permute.xlu0 6
      %259 = vperm.xlu0 %258, %v127
      %v260 = vpop.permute.xlu0 %259
      %262 = vset.pattern.permute.xlu0 6
      %263 = vperm.xlu0 %262, %v128
      %v264 = vpop.permute.xlu0 %263
      %266 = vset.pattern.permute.xlu0 6
      %267 = vperm.xlu0 %266, %v129
      %v268 = vpop.permute.xlu0 %267
      %v270 = vmul.f32 %v256, %v122
      %v271 = vmul.f32 %v260, %v123
      %v272 = vmul.f32 %v264, %v124
      %v273 = vmul.f32 %v268, %v125
      %274 = vset.pattern.permute.xlu0 7
      %275 = vperm.xlu0 %274, %v126
      %v276 = vpop.permute.xlu0 %275
      %278 = vset.pattern.permute.xlu0 7
      %279 = vperm.xlu0 %278, %v127
      %v280 = vpop.permute.xlu0 %279
      %282 = vset.pattern.permute.xlu0 7
      %283 = vperm.xlu0 %282, %v128
      %v284 = vpop.permute.xlu0 %283
      %286 = vset.pattern.permute.xlu0 7
      %287 = vperm.xlu0 %286, %v129
      %v288 = vpop.permute.xlu0 %287
      %v290 = vmul.f32 %v276, %v122
      %v291 = vmul.f32 %v280, %v123
      %v292 = vmul.f32 %v284, %v124
      %v293 = vmul.f32 %v288, %v125
      %294 = vset.pattern.permute.xlu0 8
      %295 = vperm.xlu0 %294, %v126
      %v296 = vpop.permute.xlu0 %295
      %298 = vset.pattern.permute.xlu0 8
      %299 = vperm.xlu0 %298, %v127
      %v300 = vpop.permute.xlu0 %299
      %302 = vset.pattern.permute.xlu0 8
      %303 = vperm.xlu0 %302, %v128
      %v304 = vpop.permute.xlu0 %303
      %306 = vset.pattern.permute.xlu0 8
      %307 = vperm.xlu0 %306, %v129
      %v308 = vpop.permute.xlu0 %307
      %v310 = vmul.f32 %v296, %v122
      %v311 = vmul.f32 %v300, %v123
      %v312 = vmul.f32 %v304, %v124
      %v313 = vmul.f32 %v308, %v125
      %314 = vset.pattern.permute.xlu0 9
      %315 = vperm.xlu0 %314, %v126
      %v316 = vpop.permute.xlu0 %315
      %318 = vset.pattern.permute.xlu0 9
      %319 = vperm.xlu0 %318, %v127
      %v320 = vpop.permute.xlu0 %319
      %322 = vset.pattern.permute.xlu0 9
      %323 = vperm.xlu0 %322, %v128
      %v324 = vpop.permute.xlu0 %323
      %326 = vset.pattern.permute.xlu0 9
      %327 = vperm.xlu0 %326, %v129
      %v328 = vpop.permute.xlu0 %327
      %v330 = vmul.f32 %v316, %v122
      %v331 = vmul.f32 %v320, %v123
      %v332 = vmul.f32 %v324, %v124
      %v333 = vmul.f32 %v328, %v125
      %334 = vset.pattern.permute.xlu0 10
      %335 = vperm.xlu0 %334, %v126
      %v336 = vpop.permute.xlu0 %335
      %338 = vset.pattern.permute.xlu0 10
      %339 = vperm.xlu0 %338, %v127
      %v340 = vpop.permute.xlu0 %339
      %342 = vset.pattern.permute.xlu0 10
      %343 = vperm.xlu0 %342, %v128
      %v344 = vpop.permute.xlu0 %343
      %346 = vset.pattern.permute.xlu0 10
      %347 = vperm.xlu0 %346, %v129
      %v348 = vpop.permute.xlu0 %347
      %v350 = vmul.f32 %v336, %v122
      %v351 = vmul.f32 %v340, %v123
      %v352 = vmul.f32 %v344, %v124
      %v353 = vmul.f32 %v348, %v125
      %354 = vset.pattern.permute.xlu0 11
      %355 = vperm.xlu0 %354, %v126
      %v356 = vpop.permute.xlu0 %355
      %358 = vset.pattern.permute.xlu0 11
      %359 = vperm.xlu0 %358, %v127
      %v360 = vpop.permute.xlu0 %359
      %362 = vset.pattern.permute.xlu0 11
      %363 = vperm.xlu0 %362, %v128
      %v364 = vpop.permute.xlu0 %363
      %366 = vset.pattern.permute.xlu0 11
      %367 = vperm.xlu0 %366, %v129
      %v368 = vpop.permute.xlu0 %367
      %v370 = vmul.f32 %v356, %v122
      %v371 = vmul.f32 %v360, %v123
      %v372 = vmul.f32 %v364, %v124
      %v373 = vmul.f32 %v368, %v125
      %374 = vset.pattern.permute.xlu0 12
      %375 = vperm.xlu0 %374, %v126
      %v376 = vpop.permute.xlu0 %375
      %378 = vset.pattern.permute.xlu0 12
      %379 = vperm.xlu0 %378, %v127
      %v380 = vpop.permute.xlu0 %379
      %382 = vset.pattern.permute.xlu0 12
      %383 = vperm.xlu0 %382, %v128
      %v384 = vpop.permute.xlu0 %383
      %386 = vset.pattern.permute.xlu0 12
      %387 = vperm.xlu0 %386, %v129
      %v388 = vpop.permute.xlu0 %387
      %v390 = vmul.f32 %v376, %v122
      %v391 = vmul.f32 %v380, %v123
      %v392 = vmul.f32 %v384, %v124
      %v393 = vmul.f32 %v388, %v125
      %394 = vset.pattern.permute.xlu0 13
      %395 = vperm.xlu0 %394, %v126
      %v396 = vpop.permute.xlu0 %395
      %398 = vset.pattern.permute.xlu0 13
      %399 = vperm.xlu0 %398, %v127
      %v400 = vpop.permute.xlu0 %399
      %402 = vset.pattern.permute.xlu0 13
      %403 = vperm.xlu0 %402, %v128
      %v404 = vpop.permute.xlu0 %403
      %406 = vset.pattern.permute.xlu0 13
      %407 = vperm.xlu0 %406, %v129
      %v408 = vpop.permute.xlu0 %407
      %v410 = vmul.f32 %v396, %v122
      %v411 = vmul.f32 %v400, %v123
      %v412 = vmul.f32 %v404, %v124
      %v413 = vmul.f32 %v408, %v125
      %414 = vset.pattern.permute.xlu0 14
      %415 = vperm.xlu0 %414, %v126
      %v416 = vpop.permute.xlu0 %415
      %418 = vset.pattern.permute.xlu0 14
      %419 = vperm.xlu0 %418, %v127
      %v420 = vpop.permute.xlu0 %419
      %422 = vset.pattern.permute.xlu0 14
      %423 = vperm.xlu0 %422, %v128
      %v424 = vpop.permute.xlu0 %423
      %426 = vset.pattern.permute.xlu0 14
      %427 = vperm.xlu0 %426, %v129
      %v428 = vpop.permute.xlu0 %427
      %v430 = vmul.f32 %v416, %v122
      %v431 = vmul.f32 %v420, %v123
      %v432 = vmul.f32 %v424, %v124
      %v433 = vmul.f32 %v428, %v125
      %434 = vset.pattern.permute.xlu0 15
      %435 = vperm.xlu0 %434, %v126
      %v436 = vpop.permute.xlu0 %435
      %438 = vset.pattern.permute.xlu0 15
      %439 = vperm.xlu0 %438, %v127
      %v440 = vpop.permute.xlu0 %439
      %442 = vset.pattern.permute.xlu0 15
      %443 = vperm.xlu0 %442, %v128
      %v444 = vpop.permute.xlu0 %443
      %446 = vset.pattern.permute.xlu0 15
      %447 = vperm.xlu0 %446, %v129
      %v448 = vpop.permute.xlu0 %447
      %v450 = vmul.f32 %v436, %v122
      %v451 = vmul.f32 %v440, %v123
      %v452 = vmul.f32 %v444, %v124
      %v453 = vmul.f32 %v448, %v125
      %458 = vrot.lane.b32.xlu0 %v122, 1
      %v459 = vpop.permute.xlu0 %458
      %460 = vrot.lane.b32.xlu0 %v123, 1
      %v461 = vpop.permute.xlu0 %460
      %462 = vrot.lane.b32.xlu0 %v124, 1
      %v463 = vpop.permute.xlu0 %462
      %464 = vrot.lane.b32.xlu0 %v125, 1
      %v465 = vpop.permute.xlu0 %464
      %474 = vrot.lane.b32.xlu0 %v150, 17
      %v475 = vpop.permute.xlu0 %474
      %476 = vrot.lane.b32.xlu0 %v151, 17
      %v477 = vpop.permute.xlu0 %476
      %478 = vrot.lane.b32.xlu0 %v152, 17
      %v479 = vpop.permute.xlu0 %478
      %480 = vrot.lane.b32.xlu0 %v153, 17
      %v481 = vpop.permute.xlu0 %480
      %490 = vrot.lane.b32.xlu0 %v170, 33
      %v491 = vpop.permute.xlu0 %490
      %492 = vrot.lane.b32.xlu0 %v171, 33
      %v493 = vpop.permute.xlu0 %492
      %494 = vrot.lane.b32.xlu0 %v172, 33
      %v495 = vpop.permute.xlu0 %494
      %496 = vrot.lane.b32.xlu0 %v173, 33
      %v497 = vpop.permute.xlu0 %496
      %506 = vrot.lane.b32.xlu0 %v190, 49
      %v507 = vpop.permute.xlu0 %506
      %508 = vrot.lane.b32.xlu0 %v191, 49
      %v509 = vpop.permute.xlu0 %508
      %510 = vrot.lane.b32.xlu0 %v192, 49
      %v511 = vpop.permute.xlu0 %510
      %512 = vrot.lane.b32.xlu0 %v193, 49
      %v513 = vpop.permute.xlu0 %512
      %522 = vrot.lane.b32.xlu0 %v210, 65
      %v523 = vpop.permute.xlu0 %522
      %524 = vrot.lane.b32.xlu0 %v211, 65
      %v525 = vpop.permute.xlu0 %524
      %526 = vrot.lane.b32.xlu0 %v212, 65
      %v527 = vpop.permute.xlu0 %526
      %528 = vrot.lane.b32.xlu0 %v213, 65
      %v529 = vpop.permute.xlu0 %528
      %538 = vrot.lane.b32.xlu0 %v230, 81
      %v539 = vpop.permute.xlu0 %538
      %540 = vrot.lane.b32.xlu0 %v231, 81
      %v541 = vpop.permute.xlu0 %540
      %542 = vrot.lane.b32.xlu0 %v232, 81
      %v543 = vpop.permute.xlu0 %542
      %544 = vrot.lane.b32.xlu0 %v233, 81
      %v545 = vpop.permute.xlu0 %544
      %554 = vrot.lane.b32.xlu0 %v250, 97
      %v555 = vpop.permute.xlu0 %554
      %556 = vrot.lane.b32.xlu0 %v251, 97
      %v557 = vpop.permute.xlu0 %556
      %558 = vrot.lane.b32.xlu0 %v252, 97
      %v559 = vpop.permute.xlu0 %558
      %560 = vrot.lane.b32.xlu0 %v253, 97
      %v561 = vpop.permute.xlu0 %560
      %570 = vrot.lane.b32.xlu0 %v270, 113
      %v571 = vpop.permute.xlu0 %570
      %572 = vrot.lane.b32.xlu0 %v271, 113
      %v573 = vpop.permute.xlu0 %572
      %574 = vrot.lane.b32.xlu0 %v272, 113
      %v575 = vpop.permute.xlu0 %574
      %576 = vrot.lane.b32.xlu0 %v273, 113
      %v577 = vpop.permute.xlu0 %576
      %586 = vrot.lane.b32.xlu0 %v290, 1
      %v587 = vpop.permute.xlu0 %586
      %588 = vrot.lane.b32.xlu0 %v291, 1
      %v589 = vpop.permute.xlu0 %588
      %590 = vrot.lane.b32.xlu0 %v292, 1
      %v591 = vpop.permute.xlu0 %590
      %592 = vrot.lane.b32.xlu0 %v293, 1
      %v593 = vpop.permute.xlu0 %592
      %602 = vrot.lane.b32.xlu0 %v310, 17
      %v603 = vpop.permute.xlu0 %602
      %604 = vrot.lane.b32.xlu0 %v311, 17
      %v605 = vpop.permute.xlu0 %604
      %606 = vrot.lane.b32.xlu0 %v312, 17
      %v607 = vpop.permute.xlu0 %606
      %608 = vrot.lane.b32.xlu0 %v313, 17
      %v609 = vpop.permute.xlu0 %608
      %618 = vrot.lane.b32.xlu0 %v330, 33
      %v619 = vpop.permute.xlu0 %618
      %620 = vrot.lane.b32.xlu0 %v331, 33
      %v621 = vpop.permute.xlu0 %620
      %622 = vrot.lane.b32.xlu0 %v332, 33
      %v623 = vpop.permute.xlu0 %622
      %624 = vrot.lane.b32.xlu0 %v333, 33
      %v625 = vpop.permute.xlu0 %624
      %634 = vrot.lane.b32.xlu0 %v350, 49
      %v635 = vpop.permute.xlu0 %634
      %636 = vrot.lane.b32.xlu0 %v351, 49
      %v637 = vpop.permute.xlu0 %636
      %638 = vrot.lane.b32.xlu0 %v352, 49
      %v639 = vpop.permute.xlu0 %638
      %640 = vrot.lane.b32.xlu0 %v353, 49
      %v641 = vpop.permute.xlu0 %640
      %650 = vrot.lane.b32.xlu0 %v370, 65
      %v651 = vpop.permute.xlu0 %650
      %652 = vrot.lane.b32.xlu0 %v371, 65
      %v653 = vpop.permute.xlu0 %652
      %654 = vrot.lane.b32.xlu0 %v372, 65
      %v655 = vpop.permute.xlu0 %654
      %656 = vrot.lane.b32.xlu0 %v373, 65
      %v657 = vpop.permute.xlu0 %656
      %666 = vrot.lane.b32.xlu0 %v390, 81
      %v667 = vpop.permute.xlu0 %666
      %668 = vrot.lane.b32.xlu0 %v391, 81
      %v669 = vpop.permute.xlu0 %668
      %670 = vrot.lane.b32.xlu0 %v392, 81
      %v671 = vpop.permute.xlu0 %670
      %672 = vrot.lane.b32.xlu0 %v393, 81
      %v673 = vpop.permute.xlu0 %672
      %682 = vrot.lane.b32.xlu0 %v410, 97
      %v683 = vpop.permute.xlu0 %682
      %684 = vrot.lane.b32.xlu0 %v411, 97
      %v685 = vpop.permute.xlu0 %684
      %686 = vrot.lane.b32.xlu0 %v412, 97
      %v687 = vpop.permute.xlu0 %686
      %688 = vrot.lane.b32.xlu0 %v413, 97
      %v689 = vpop.permute.xlu0 %688
      %vm694 = vcmask 7168
      %v695 = vsel %vm694, 1.0, %v459
      %v696 = vsel %vm694, 1.0, %v461
      %v697 = vsel %vm694, 1.0, %v463
      %v698 = vsel %vm694, 1.0, %v465
      %vm699 = vcmask 138240
      %v700 = vsel %vm699, %v695, %v475
      %v701 = vsel %vm699, %v696, %v477
      %v702 = vsel %vm699, %v697, %v479
      %v703 = vsel %vm699, %v698, %v481
      %vm704 = vcmask 269312
      %v705 = vsel %vm704, %v700, %v491
      %v706 = vsel %vm704, %v701, %v493
      %v707 = vsel %vm704, %v702, %v495
      %v708 = vsel %vm704, %v703, %v497
      %vm709 = vcmask 400384
      %v710 = vsel %vm709, %v705, %v507
      %v711 = vsel %vm709, %v706, %v509
      %v712 = vsel %vm709, %v707, %v511
      %v713 = vsel %vm709, %v708, %v513
      %vm714 = vcmask 531456
      %v715 = vsel %vm714, %v710, %v523
      %v716 = vsel %vm714, %v711, %v525
      %v717 = vsel %vm714, %v712, %v527
      %v718 = vsel %vm714, %v713, %v529
      %vm719 = vcmask 662528
      %v720 = vsel %vm719, %v715, %v539
      %v721 = vsel %vm719, %v716, %v541
      %v722 = vsel %vm719, %v717, %v543
      %v723 = vsel %vm719, %v718, %v545
      %vm724 = vcmask 793600
      %v725 = vsel %vm724, %v720, %v555
      %v726 = vsel %vm724, %v721, %v557
      %v727 = vsel %vm724, %v722, %v559
      %v728 = vsel %vm724, %v723, %v561
      %vm729 = vcmask 924672
      %v730 = vsel %vm729, %v725, %v571
      %v731 = vsel %vm729, %v726, %v573
      %v732 = vsel %vm729, %v727, %v575
      %v733 = vsel %vm729, %v728, %v577
      %v734 = vsel %vm694, %v571, %v587
      %v735 = vsel %vm694, %v573, %v589
      %v736 = vsel %vm694, %v575, %v591
      %v737 = vsel %vm694, %v577, %v593
      %v738 = vsel %vm699, %v734, %v603
      %v739 = vsel %vm699, %v735, %v605
      %v740 = vsel %vm699, %v736, %v607
      %v741 = vsel %vm699, %v737, %v609
      %v742 = vsel %vm704, %v738, %v619
      %v743 = vsel %vm704, %v739, %v621
      %v744 = vsel %vm704, %v740, %v623
      %v745 = vsel %vm704, %v741, %v625
      %v746 = vsel %vm709, %v742, %v635
      %v747 = vsel %vm709, %v743, %v637
      %v748 = vsel %vm709, %v744, %v639
      %v749 = vsel %vm709, %v745, %v641
      %v750 = vsel %vm714, %v746, %v651
      %v751 = vsel %vm714, %v747, %v653
      %v752 = vsel %vm714, %v748, %v655
      %v753 = vsel %vm714, %v749, %v657
      %v754 = vsel %vm719, %v750, %v667
      %v755 = vsel %vm719, %v751, %v669
      %v756 = vsel %vm719, %v752, %v671
      %v757 = vsel %vm719, %v753, %v673
      %v758 = vsel %vm724, %v754, %v683
      %v759 = vsel %vm724, %v755, %v685
      %v760 = vsel %vm724, %v756, %v687
      %v761 = vsel %vm724, %v757, %v689
      %766 = vrot.lane.b32.xlu0 %v450, 16
      %v767 = vpop.permute.xlu0 %766
      %768 = vrot.lane.b32.xlu0 %v451, 16
      %v769 = vpop.permute.xlu0 %768
      %770 = vrot.lane.b32.xlu0 %v452, 16
      %v771 = vpop.permute.xlu0 %770
      %772 = vrot.lane.b32.xlu0 %v453, 16
      %v773 = vpop.permute.xlu0 %772
      %vm778 = vcmask 130048
      %v779 = vsel %vm778, %v430, %v767
      %v780 = vsel %vm778, %v431, %v769
      %v781 = vsel %vm778, %v432, %v771
      %v782 = vsel %vm778, %v433, %v773
      %787 = vrot.lane.b32.xlu0 %v779, 113
      %v788 = vpop.permute.xlu0 %787
      %789 = vrot.lane.b32.xlu0 %v780, 113
      %v790 = vpop.permute.xlu0 %789
      %791 = vrot.lane.b32.xlu0 %v781, 113
      %v792 = vpop.permute.xlu0 %791
      %793 = vrot.lane.b32.xlu0 %v782, 113
      %v794 = vpop.permute.xlu0 %793
      %v799 = vsel %vm729, %v758, %v788
      %v800 = vsel %vm729, %v759, %v790
      %v801 = vsel %vm729, %v760, %v792
      %v802 = vsel %vm729, %v761, %v794
      %803 = vst [vmem:[%s120] sm:$0xff] %v730
      %804 = vst [vmem:[%s120 + $0x8] sm:$0xff] %v799
      %805 = vst.msk [vmem:[%s120 + $0x10] sm:$0xff] %vm699, %v788
      %806 = vst [vmem:[%s120 + $0x18] sm:$0xff] %v731
      %807 = vst [vmem:[%s120 + $0x20] sm:$0xff] %v800
      %808 = vst.msk [vmem:[%s120 + $0x28] sm:$0xff] %vm699, %v790
      %809 = vst [vmem:[%s120 + $0x30] sm:$0xff] %v732
      %810 = vst [vmem:[%s120 + $0x38] sm:$0xff] %v801
      %811 = vst.msk [vmem:[%s120 + $0x40] sm:$0xff] %vm699, %v792
      %812 = vst [vmem:[%s120 + $0x48] sm:$0xff] %v733
      %813 = vst [vmem:[%s120 + $0x50] sm:$0xff] %v802
      %814 = vst.msk [vmem:[%s120 + $0x58] sm:$0xff] %vm699, %v794
      %s815 = smul.u32 4, %s12
      %p816 = scmp.lt.s32.totalorder %s815, 15
      %s817 = scalar_select %p816, %s815, 15
      %s818 = smul.addr %s817, 3
      %s819 = smul.addr %s818, 8
      %s820 = scalar_lea.vmem %s1, %s819
      // Predicated region
      $region25: #{tpu_custom_call.1} parent=23 // pred_check
        %p821 = pneg %p56
      $region26: #{tpu_custom_call.1} parent=23 // pred_check_branch
        %823 = sbr.rel (%p821) target = $region28
      $region27: #{tpu_custom_call.1} parent=23 // pred_region
        %s824 = smul.u32 4, %s12
      $region28: #{tpu_custom_call.1} parent=23 // pred_fallthru
        _
    $region24: #{tpu_custom_call.1} parent=5 // pred_fallthru
      _
    %p825 = scmp.le.s32.totalorder 2, %s7
    // Predicated region
    $region29: #{tpu_custom_call.1} parent=5 // pred_check
      %p826 = pneg %p825
    $region30: #{tpu_custom_call.1} parent=5 // pred_check_branch
      %828 = sbr.rel (%p826) target = $region32
    $region31: #{tpu_custom_call.1} parent=5 // pred_region
      %s829 = ssub.s32 %s7, 2
      // Predicated region
      $region33: #{tpu_custom_call.1} parent=31 // pred_check
        %p830 = pneg %p62
      $region34: #{tpu_custom_call.1} parent=31 // pred_check_branch
        %832 = sbr.rel (%p830) target = $region36
      $region35: #{tpu_custom_call.1} parent=31 // pred_region
        %s833 = smul.u32 4, %s13
        %p834 = scmp.lt.s32.totalorder %s833, 15
        %s835 = scalar_select %p834, %s833, 15
        %s836 = smul.addr %s835, 3
        %s837 = smul.addr %s836, 8
        %s838 = scalar_lea.vmem %s1, %s837
      $region36: #{tpu_custom_call.1} parent=31 // pred_fallthru
        _
    $region32: #{tpu_custom_call.1} parent=5 // pred_fallthru
      _
  $region6: #{tpu_custom_call.1} parent=0 // loop_footer
    %s11 = sadd.s32 1, %s7
  $region7: #{tpu_custom_call.1} parent=0 // loop_footer_branch
    %6 = sbr.rel target = $region3
  $region8: #{tpu_custom_call.1} parent=0 // loop_exit
    _

</llo_original>
